<compile_context>
chip_gen: v5e
topology: v5e:2x2
jax: 0.10.0
libtpu: 0.0.40
codegen_flags: <defaults>
</compile_context>

<pallas_src>
import math

import jax
import jax.numpy as jnp
from jax.experimental import pallas as pl
from jax.experimental.pallas import tpu as pltpu


def _copy_kernel(x_ref, o_ref):
    # Pure passthrough of the current VMEM tile.
    o_ref[...] = x_ref[...]


def _round_up(a, b):
    return ((a + b - 1) // b) * b


def _block_config():
    """Per-generation (target block bytes, vmem_limit_bytes) for the copy."""
    try:
        kind = jax.devices()[0].device_kind.lower()
    except Exception:
        kind = ""
    if "v7" in kind or "v6" in kind:
        # v7x: at ~3.2 TB/s the ~0.35 us/step overhead is ~25% of a 2 MiB
        # tile; 8 MiB tiles cut it to ~6%. Four buffers (in+out, double-
        # buffered) = 32 MiB, comfortably under a 48 MiB scoped limit
        # (v7x has 64 MiB physical VMEM, v6e has 128 MiB).
        return 8 * 1024 * 1024, 48 * 1024 * 1024
    # v5e (and unknown chips): stay near 2 MiB so four buffers fit well under
    # the 16 MiB scoped-VMEM default; the copy is HBM-DMA bound regardless.
    return 2 * 1024 * 1024, None


def identity(x):
    """Identity.forward(x): returns x. No kernel launch, no HBM traffic."""
    return x


def identity_copy(x, *, target_block_bytes=None):
    """Materialize a fresh copy of x via a Pallas streaming-copy kernel."""
    if x.ndim == 0 or x.size == 0:
        return x  # nothing to tile; identity semantics already hold

    dtype = x.dtype
    itemsize = jnp.dtype(dtype).itemsize
    sublanes = max(8, 32 // itemsize)  # 8 f32 / 16 bf16 / 32 int8
    cfg_bytes, vmem_limit = _block_config()
    block_bytes = target_block_bytes or cfg_bytes

    if x.ndim >= 2 and x.shape[-1] % 128 == 0:
        # Lane-dense path: trailing (lane) dim already a multiple of 128, so
        # collapsing leading dims does not change the lane layout -> no
        # relayout copies around the kernel, and all stores are unmasked vst.
        cols = int(x.shape[-1])
        rows = x.size // cols
        x_op = x.reshape(rows, cols)
        row_bytes = cols * itemsize  # cols already 128-aligned
        tile_rows = max(sublanes,
                        (block_bytes // row_bytes) // sublanes * sublanes)
        # Keep >=2 grid steps when possible: lets input/output DMAs pipeline
        # and lets the 'parallel' axis shard across v7x's two TensorCores.
        if tile_rows >= rows and rows > sublanes:
            tile_rows = _round_up(pl.cdiv(rows, 2), sublanes)
        tile_rows = min(tile_rows, rows)
        grid = (pl.cdiv(rows, tile_rows),)  # Pallas masks the ragged tail
        block_shape = (tile_rows, cols)
        index_map = lambda i: (i, 0)
        out_struct = jax.ShapeDtypeStruct((rows, cols), dtype)
    else:
        # Unaligned trailing dim: do NOT reshape on the host (a reshape that
        # changes the trailing dim can relayout a (8,128)-tiled HBM array).
        # Tile only the leading dim; every other block dim is full-extent,
        # which is always a legal block shape.
        x_op = x if x.ndim >= 2 else x.reshape(1, x.shape[0])
        shape = x_op.shape
        lead = int(shape[0])
        # VMEM footprint of one leading-dim slice, lane/sublane-padding aware.
        padded = list(shape[1:])
        padded[-1] = _round_up(padded[-1], 128)
        if len(padded) >= 2:
            padded[-2] = _round_up(padded[-2], sublanes)
        slice_bytes = math.prod(padded) * itemsize
        tile_lead = max(1, block_bytes // slice_bytes)
        if tile_lead >= lead and lead > 1:
            tile_lead = pl.cdiv(lead, 2)  # keep >=2 grid steps
        tile_lead = min(tile_lead, lead)
        grid = (pl.cdiv(lead, tile_lead),)
        block_shape = (tile_lead,) + tuple(shape[1:])
        ndim = len(shape)
        index_map = lambda i: (i,) + (0,) * (ndim - 1)
        out_struct = jax.ShapeDtypeStruct(shape, dtype)
        # TODO(synk): if a single leading-dim slice ever exceeds the VMEM
        # budget, additionally tile the second-to-last dim.

    compiler_kwargs = dict(dimension_semantics=("parallel",))
    if vmem_limit is not None:
        compiler_kwargs["vmem_limit_bytes"] = vmem_limit

    out = pl.pallas_call(
        _copy_kernel,
        out_shape=out_struct,
        grid_spec=pltpu.PrefetchScalarGridSpec(
            num_scalar_prefetch=0,
            grid=grid,
            in_specs=[pl.BlockSpec(block_shape, index_map)],
            out_specs=pl.BlockSpec(block_shape, index_map),
        ),
        compiler_params=pltpu.CompilerParams(**compiler_kwargs),
        # Real copy: no input_output_aliases (aliasing while still launching
        # the kernel would DMA each tile back to its own HBM address — 2*n
        # bytes of wasted bandwidth; the pure-identity path is `identity`).
        cost_estimate=pl.CostEstimate(
            flops=0,
            transcendentals=0,
            bytes_accessed=2 * x.size * itemsize,
        ),
    )(x_op)

    return out.reshape(x.shape)


if __name__ == "__main__":
    key = jax.random.PRNGKey(0)

    # Primary example consistent with the module's forward: NCHW input.
    x = jax.random.normal(key, (2, 4, 16, 16), dtype=jnp.float32)

    # Identity.forward: pure passthrough, zero HBM traffic, no kernel launch.
    y = identity(x)
    assert y is x

    # Pallas streaming copy (fresh buffer); exercises the unaligned N-D path.
    y_copy = identity_copy(x)
    jax.block_until_ready(y_copy)
    assert y_copy.shape == x.shape and y_copy.dtype == x.dtype
    assert bool(jnp.all(y_copy == x))

    # Lane-dense path: trailing dim is a multiple of 128 (flatten is legal).
    x2 = jax.random.normal(jax.random.PRNGKey(1), (4, 8, 256), dtype=jnp.float32)
    y2 = identity_copy(x2)
    jax.block_until_ready(y2)
    assert y2.shape == x2.shape and bool(jnp.all(y2 == x2))

    print("KERNEL_OK")
</pallas_src>

<mosaic_0001>
module attributes {stable_mosaic.version = 11 : i64} {
  func.func @_copy_kernel(%arg0: i32, %arg1: memref<1x4x16x16xf32, #tpu.memory_space<vmem>>, %arg2: memref<1x4x16x16xf32, #tpu.memory_space<vmem>>) attributes {dimension_semantics = [#tpu.dimension_semantics<parallel>], iteration_bounds = array<i64: 2>, scalar_prefetch = 0 : i64, scratch_operands = 0 : i64, tpu.core_type = #tpu.core_type<tc>, window_params = [{transform_indices = @transform_0, window_bounds = array<i64: 1, 4, 16, 16>}, {transform_indices = @transform_1, window_bounds = array<i64: 1, 4, 16, 16>}]} {
    %c0 = arith.constant 0 : index
    %c0_0 = arith.constant 0 : index
    %c0_1 = arith.constant 0 : index
    %c0_2 = arith.constant 0 : index
    %0 = vector.load %arg1[%c0, %c0_0, %c0_1, %c0_2] : memref<1x4x16x16xf32, #tpu.memory_space<vmem>>, vector<1x4x16x16xf32>
    %c0_3 = arith.constant 0 : index
    %c0_4 = arith.constant 0 : index
    %c0_5 = arith.constant 0 : index
    %c0_6 = arith.constant 0 : index
    %1 = vector.load %arg2[%c0_3, %c0_4, %c0_5, %c0_6] : memref<1x4x16x16xf32, #tpu.memory_space<vmem>>, vector<1x4x16x16xf32>
    tpu.vector_store %arg2[%c0_3, %c0_4, %c0_5, %c0_6], %0 {strides = array<i32>} : memref<1x4x16x16xf32, #tpu.memory_space<vmem>>, vector<1x4x16x16xf32>,
    return
  }
  func.func @transform_0(%arg0: i32) -> (i32, i32, i32, i32) {
    %c0_i32 = arith.constant 0 : i32
    %c0_i32_0 = arith.constant 0 : i32
    %c0_i32_1 = arith.constant 0 : i32
    %c0_i32_2 = arith.constant 0 : i32
    return %arg0, %c0_i32, %c0_i32_0, %c0_i32_1 : i32, i32, i32, i32
  }
  func.func @transform_1(%arg0: i32) -> (i32, i32, i32, i32) {
    %c0_i32 = arith.constant 0 : i32
    %c0_i32_0 = arith.constant 0 : i32
    %c0_i32_1 = arith.constant 0 : i32
    %c0_i32_2 = arith.constant 0 : i32
    return %arg0, %c0_i32, %c0_i32_0, %c0_i32_1 : i32, i32, i32, i32
  }
}

</mosaic_0001>

<llo_original>
// kernel: tpu_custom_call.1
$region0: #{tpu_custom_call.1}
  #allocation0 [shape = 'u32[]', space=smem, size = 0x4, offset = 0x4, fixed_abs, tag = 'smem constant byte address 0x4 - core index']
  #allocation1 [shape = 'u32[72,128]{1,0:T(1,128)}', space=vmem, size = 0x9000, scoped, tag = 'internal scratch']
  %s0 = inlined_call_operand.hbm [shape: f32[2,4,16,16], index: 0, kind: input, shape index: {}]
  %s1 = inlined_call_operand.hbm [shape: f32[2,4,16,16], index: 1, kind: output, shape index: {}]
  %s2 = sld [smem:[#allocation0]]
  $region41: #{tpu_custom_call.1} parent=0
    _
  %s4 = ssub.s32 1, %s2
  %s5 = scalar_select 0, %s4, %s2
  $region1: #{tpu_custom_call.1} parent=0
    #allocation2 [shape = 'u8[65536]{0}', space=vmem, size = 0x10000, scoped, tag = 'input window, operand 0']
    #allocation3 [shape = 's32[2]{0}', space=sflag, size = 0x8, scoped, tag = 'scoped memory for tpu_custom_call.1']
    #allocation4 [shape = 's32[2]{0}', space=sflag, size = 0x8, scoped, tag = 'scoped memory for tpu_custom_call.1']
    #allocation5 [shape = 'u8[65536]{0}', space=vmem, size = 0x10000, scoped, tag = 'output window, operand 0']
    %6 = vsyncpa [#allocation3], 0
    %s7 = scalar_lea.sflag [#allocation3], 1
    %8 = vsyncpa %s7, 0
    %9 = vsyncpa [#allocation4], 0
    %s10 = scalar_lea.sflag [#allocation4], 1
    %11 = vsyncpa %s10, 0
    loop: start=0, step=1, limit=4
    $region2: #{tpu_custom_call.1} parent=1 // loop_pre_header
      _
    $region3: #{tpu_custom_call.1} parent=1 // loop_header
      %s13 = sphi 0, %s17
      %p14 = scmp.ge.s32.totalorder %s13, 4
      %s23 = sphi 0, %s25
      %s26 = sphi 0, %s23
      %s27 = sphi 0, %s26
      %s43 = sphi 0, %s27
      %s49 = sphi 0, %s51
      %s52 = sphi 0, %s49
      %s53 = sphi 0, %s52
      %s69 = sphi 0, %s53
    $region4: #{tpu_custom_call.1} parent=1 // loop_header_branch
      %16 = sbr.rel (%p14) target = $region8
    $region5: #{tpu_custom_call.1} parent=1 // loop_body
      %s18 = ssub.s32 %s13, 1
      %s19 = ssub.s32 %s13, 2
      %s20 = sadd.s32 %s13, 1
      %s21 = ssub.s32 %s13, %s20
      %p22 = scmp.eq.s32.totalorder %s21, 0
      %s24 = sadd.s32 %s23, 1
      %s25 = scalar_select %p22, %s23, %s24
      %p28 = pneg %p22
      %p29 = scmp.eq.s32.totalorder %s13, 1
      %p30 = por %p28, %p29
      %p31 = scmp.ne.s32.totalorder %s23, %s26
      %p32 = scmp.eq.s32.totalorder %s13, 0
      %p33 = por %p31, %p32
      %p34 = scmp.ne.s32.totalorder %s23, %s26
      %p35 = scmp.eq.s32.totalorder %s18, 1
      %p36 = por %p34, %p35
      %p37 = scmp.ne.s32.totalorder %s26, %s27
      %p38 = scmp.eq.s32.totalorder %s18, 0
      %p39 = por %p37, %p38
      %p40 = scmp.ne.s32.totalorder %s26, %s27
      %p41 = scmp.eq.s32.totalorder %s19, 1
      %p42 = por %p40, %p41
      %p44 = scmp.ne.s32.totalorder %s27, %s43
      %p45 = scmp.eq.s32.totalorder %s19, 0
      %p46 = por %p44, %p45
      %s47 = ssub.s32 %s13, %s20
      %p48 = scmp.eq.s32.totalorder %s47, 0
      %s50 = sadd.s32 %s49, 1
      %s51 = scalar_select %p48, %s49, %s50
      %p54 = pneg %p48
      %p55 = scmp.eq.s32.totalorder %s13, 1
      %p56 = por %p54, %p55
      %p57 = scmp.ne.s32.totalorder %s49, %s52
      %p58 = scmp.eq.s32.totalorder %s13, 0
      %p59 = por %p57, %p58
      %p60 = scmp.ne.s32.totalorder %s49, %s52
      %p61 = scmp.eq.s32.totalorder %s18, 1
      %p62 = por %p60, %p61
      %p63 = scmp.ne.s32.totalorder %s52, %s53
      %p64 = scmp.eq.s32.totalorder %s18, 0
      %p65 = por %p63, %p64
      %p66 = scmp.ne.s32.totalorder %s52, %s53
      %p67 = scmp.eq.s32.totalorder %s19, 1
      %p68 = por %p66, %p67
      %p70 = scmp.ne.s32.totalorder %s53, %s69
      %p71 = scmp.eq.s32.totalorder %s19, 0
      %p72 = por %p70, %p71
      %p73 = scmp.le.s32.totalorder 1, %s13
      %p74 = scmp.lt.s32.totalorder %s13, 3
      %p75 = pnand %p73, %p74
      %p76 = pneg %p75
      // Predicated region
      $region9: #{tpu_custom_call.1} parent=5 // pred_check
        _
      $region10: #{tpu_custom_call.1} parent=5 // pred_check_branch
        %78 = sbr.rel (%p75) target = $region12
      $region11: #{tpu_custom_call.1} parent=5 // pred_region
        %s79 = ssub.s32 %s13, 1
      $region12: #{tpu_custom_call.1} parent=5 // pred_fallthru
        _
      %p80 = scmp.lt.s32.totalorder %s13, 2
      // Predicated region
      $region13: #{tpu_custom_call.1} parent=5 // pred_check
        %p81 = pneg %p80
      $region14: #{tpu_custom_call.1} parent=5 // pred_check_branch
        %83 = sbr.rel (%p81) target = $region16
      $region15: #{tpu_custom_call.1} parent=5 // pred_region
        // Predicated region
        $region17: #{tpu_custom_call.1} parent=15 // pred_check
          %p84 = pneg %p33
        $region18: #{tpu_custom_call.1} parent=15 // pred_check_branch
          %86 = sbr.rel (%p84) target = $region20
        $region19: #{tpu_custom_call.1} parent=15 // pred_region
          %s87 = sand.u32 %s23, 1
          %s88 = scalar_lea.sflag [#allocation3], %s87
          %s89 = sand.u32 %s23, 1
          %s90 = smul.addr %s89, 64
          %s91 = scalar_lea.vmem [#allocation2], %s90
          %93 = vsyncadd %s88, 0
          %s94 = smul.addr %s13, 8
          %s95 = smul.addr %s94, 8
          %s96 = scalar_lea.hbm %s0, %s95
          %s97 = sshll.u32 %s96, 4
          %s98 = int_to_ptr.hbm [resolvable:$true] %s97
          %s99 = sshll.u32 %s91, 4
          %s100 = int_to_ptr.vmem [resolvable:$true] %s99
          %105 = dma.hbm_to_vmem [thread:$0]  %s98, 1024, %s100, %s88, 128, 128, 8
        $region20: #{tpu_custom_call.1} parent=15 // pred_fallthru
          _
      $region16: #{tpu_custom_call.1} parent=5 // pred_fallthru
        _
      %p106 = scmp.le.s32.totalorder 1, %s13
      %p107 = scmp.lt.s32.totalorder %s13, 3
      %p108 = pnand %p106, %p107
      %p109 = pneg %p108
      // Predicated region
      $region21: #{tpu_custom_call.1} parent=5 // pred_check
        _
      $region22: #{tpu_custom_call.1} parent=5 // pred_check_branch
        %111 = sbr.rel (%p108) target = $region24
      $region23: #{tpu_custom_call.1} parent=5 // pred_region
        %s112 = ssub.s32 %s13, 1
        %s113 = sand.u32 %s26, 1
        %s114 = scalar_lea.sflag [#allocation3], %s113
        %s115 = sand.u32 %s26, 1
        %s116 = smul.addr %s115, 64
        %s117 = scalar_lea.vmem [#allocation2], %s116
        // Predicated region
        $region25: #{tpu_custom_call.1} parent=23 // pred_check
          %p118 = pneg %p39
        $region26: #{tpu_custom_call.1} parent=23 // pred_check_branch
          %120 = sbr.rel (%p118) target = $region28
        $region27: #{tpu_custom_call.1} parent=23 // pred_region
          %122 = dma.done %s114, 1024
        $region28: #{tpu_custom_call.1} parent=23 // pred_fallthru
          _
        %s123 = sand.u32 %s26, 1
        %s124 = scalar_lea.sflag [#allocation3], %s123
        %s125 = sand.u32 %s26, 1
        %s126 = smul.addr %s125, 64
        %s127 = scalar_lea.vmem [#allocation2], %s126
        %p128 = pneg %p39
        %p129 = pneg %p36
        %p130 = pneg %p65
        %p131 = pneg %p62
        %s132 = sand.u32 %s52, 1
        %s133 = scalar_lea.sflag [#allocation4], %s132
        %s134 = sand.u32 %s52, 1
        %s135 = smul.addr %s134, 64
        %s136 = scalar_lea.vmem [#allocation5], %s135
        %v137 = vld [vmem:[%s117] sm:$0xff]
        %v138 = vld [vmem:[%s117 + $0x8] sm:$0xff]
        %v139 = vld [vmem:[%s117 + $0x10] sm:$0xff]
        %v140 = vld [vmem:[%s117 + $0x18] sm:$0xff]
        %v141 = vld [vmem:[%s117 + $0x20] sm:$0xff]
        %v142 = vld [vmem:[%s117 + $0x28] sm:$0xff]
        %v143 = vld [vmem:[%s117 + $0x30] sm:$0xff]
        %v144 = vld [vmem:[%s117 + $0x38] sm:$0xff]
        %vm145 = vcmask 130048
        %146 = vst.msk [vmem:[%s136] sm:$0xff] %vm145, %v137
        %147 = vst.msk [vmem:[%s136 + $0x8] sm:$0xff] %vm145, %v138
        %148 = vst.msk [vmem:[%s136 + $0x10] sm:$0xff] %vm145, %v139
        %149 = vst.msk [vmem:[%s136 + $0x18] sm:$0xff] %vm145, %v140
        %150 = vst.msk [vmem:[%s136 + $0x20] sm:$0xff] %vm145, %v141
        %151 = vst.msk [vmem:[%s136 + $0x28] sm:$0xff] %vm145, %v142
        %152 = vst.msk [vmem:[%s136 + $0x30] sm:$0xff] %vm145, %v143
        %153 = vst.msk [vmem:[%s136 + $0x38] sm:$0xff] %vm145, %v144
        %s154 = sand.u32 %s52, 1
        %s155 = scalar_lea.sflag [#allocation4], %s154
        %s156 = sand.u32 %s52, 1
        %s157 = smul.addr %s156, 64
        %s158 = scalar_lea.vmem [#allocation5], %s157
        // Predicated region
        $region29: #{tpu_custom_call.1} parent=23 // pred_check
          %p159 = pneg %p62
        $region30: #{tpu_custom_call.1} parent=23 // pred_check_branch
          %161 = sbr.rel (%p159) target = $region32
        $region31: #{tpu_custom_call.1} parent=23 // pred_region
          %163 = vsyncadd %s155, 0
          %s164 = smul.addr %s18, 8
          %s165 = smul.addr %s164, 8
          %s166 = scalar_lea.hbm %s1, %s165
          %s167 = sshll.u32 %s158, 4
          %s168 = int_to_ptr.vmem [resolvable:$true] %s167
          %s169 = sshll.u32 %s166, 4
          %s170 = int_to_ptr.hbm [resolvable:$true] %s169
          %175 = dma.vmem_to_hbm [thread:$0]  %s168, 1024, %s170, %s155, 128, 128, 8
        $region32: #{tpu_custom_call.1} parent=23 // pred_fallthru
          _
      $region24: #{tpu_custom_call.1} parent=5 // pred_fallthru
        _
      %p176 = scmp.le.s32.totalorder 2, %s13
      // Predicated region
      $region33: #{tpu_custom_call.1} parent=5 // pred_check
        %p177 = pneg %p176
      $region34: #{tpu_custom_call.1} parent=5 // pred_check_branch
        %179 = sbr.rel (%p177) target = $region36
      $region35: #{tpu_custom_call.1} parent=5 // pred_region
        %s180 = ssub.s32 %s13, 2
        // Predicated region
        $region37: #{tpu_custom_call.1} parent=35 // pred_check
          %p181 = pneg %p68
        $region38: #{tpu_custom_call.1} parent=35 // pred_check_branch
          %183 = sbr.rel (%p181) target = $region40
        $region39: #{tpu_custom_call.1} parent=35 // pred_region
          %s184 = sand.u32 %s53, 1
          %s185 = scalar_lea.sflag [#allocation4], %s184
          %s186 = sand.u32 %s53, 1
          %s187 = smul.addr %s186, 64
          %s188 = scalar_lea.vmem [#allocation5], %s187
          %190 = dma.done %s185, 1024
        $region40: #{tpu_custom_call.1} parent=35 // pred_fallthru
          _
      $region36: #{tpu_custom_call.1} parent=5 // pred_fallthru
        _
    $region6: #{tpu_custom_call.1} parent=1 // loop_footer
      %s17 = sadd.s32 1, %s13
    $region7: #{tpu_custom_call.1} parent=1 // loop_footer_branch
      %12 = sbr.rel target = $region3
    $region8: #{tpu_custom_call.1} parent=1 // loop_exit
      _
    %191 = vsyncpa [#allocation3], 1
    %s192 = scalar_lea.sflag [#allocation3], 1
    %193 = vsyncpa %s192, 1
    %194 = vsyncpa [#allocation4], 1
    %s195 = scalar_lea.sflag [#allocation4], 1
    %196 = vsyncpa %s195, 1

</llo_original>
